<compile_context>
chip_gen: v7x
topology: tpu7x:2x2x1
jax: 0.10.0
libtpu: 0.0.40
codegen_flags: <defaults>
</compile_context>

<pallas_src>
import jax
import jax.numpy as jnp
from jax.experimental import pallas as pl
from jax.experimental.pallas import tpu as pltpu


def _round_up(x, m):
    return ((x + m - 1) // m) * m


def _padded_vmem_bytes(shape, dtype):
    """VMEM footprint of a block: minor dim padded to 128 lanes, second-minor
    padded to the dtype's sublane pack (8 for 4B dtypes, 16 for 2B, ...)."""
    itemsize = jnp.dtype(dtype).itemsize
    sub = 8 * max(1, 4 // itemsize)
    s = list(int(d) for d in shape)
    if s:
        s[-1] = _round_up(s[-1], 128)
    if len(s) >= 2:
        s[-2] = _round_up(s[-2], sub)
    n = 1
    for d in s:
        n *= d
    return n * itemsize


def _vmem_budget_bytes():
    """Generation-aware VMEM plan: ~24 MiB on v7x (64 MiB physical / 32 MiB
    scoped default), ~48 MiB on v5e/v6e (128 MiB physical). Conservative 24 MiB
    if the chip cannot be identified."""
    try:
        cap = int(pltpu.get_tpu_info().vmem_capacity_bytes)
    except Exception:
        return 24 << 20
    return (24 << 20) if cap <= (64 << 20) else (48 << 20)


def _num_tensorcores():
    """Best-effort TensorCore count (2 on v7x); falls back to 1 so the even-grid
    heuristic is only applied where it can help."""
    try:
        info = pltpu.get_tpu_info()
        for attr in ("num_cores", "num_tensorcores", "tensorcore_count", "core_count"):
            v = getattr(info, attr, None)
            if v:
                return int(v)
    except Exception:
        pass
    return 1


def _choose_bh(R, Wo, p, pC, E, x_dtype, w_dtype, out_dtype,
               tm_target=4096, vmem_budget=None, num_cores=None):
    """Pick bh = rows of the (N*Ho) axis per grid step (so tm = bh*Wo patch
    rows). Largest tile the VMEM budget allows (amortizes ~0.35us/step grid
    overhead), tm a multiple of 16 (bf16 sublane packing) unless a single block
    covers everything, even grid when the chip has 2 TensorCores."""
    if vmem_budget is None:
        vmem_budget = _vmem_budget_bytes()
    if num_cores is None:
        num_cores = _num_tensorcores()

    # Per bh-row VMEM, using padded (tiled) layouts: double-buffered input
    # block + one loaded-value temp, double-buffered output block, f32
    # accumulator temps. Weight/shift (double-buffered) + headroom are fixed.
    in_row = _padded_vmem_bytes((1, p, Wo, pC), x_dtype)
    out_row = Wo * _round_up(E, 128) * jnp.dtype(out_dtype).itemsize
    acc_row = Wo * _round_up(E, 128) * 4
    per_bh = 3 * in_row + 2 * out_row + 2 * acc_row
    fixed = (2 * _padded_vmem_bytes((p, pC, E), w_dtype)
             + 2 * _padded_vmem_bytes((1, E), jnp.float32)
             + (2 << 20))

    bh_cap = max(1, (vmem_budget - fixed) // max(per_bh, 1))
    bh = min(R, bh_cap, max(1, -(-tm_target // Wo)))
    if bh >= R:
        return R, 1                      # single block: tm == M (always legal)

    def _align(b):
        # tm = b*Wo must be a multiple of 8; a multiple-of-16 b guarantees it
        # for any Wo and matches bf16 (16, 128) packing.
        return max(16, (b // 16) * 16)

    bh = min(_align(bh), R)
    if bh >= R:
        return R, 1
    grid = -(-R // bh)
    if num_cores >= 2 and grid > 1 and grid % 2 == 1:
        # 2-TC chips (v7x): balance the single parallel axis across both cores.
        # Recompute the grid after rounding; only adopt if it is actually even.
        bh2 = min(_align(-(-R // (grid + 1))), R)
        if 0 < bh2 < R:
            grid2 = -(-R // bh2)
            if grid2 % 2 == 0:
                bh, grid = bh2, grid2
    return bh, grid


# ---------------------------------------------------------------------------
# Kernel: fused patch extraction (in VMEM) + conv-as-matmul + BN shift.
# BN scale is pre-folded into the weight outside the kernel (tiny array).
# ---------------------------------------------------------------------------
def _patch_embed_kernel(x_ref, w_ref, shift_ref, o_ref):
    """x_ref:  (bh, p, Wo, p*C)  raw activation rows (native dtype)
       w_ref:  (p, p*C, E)       BN-scale-folded weight (compute dtype)
       shift_ref: (1, E)         f32 BN shift
       o_ref:  (bh*Wo, E)        output rows

    For each kernel-row ph, x[:, ph] is already a (rows-of-patches, pw*C)
    contiguous slab, so the strided conv is a sum of `p` skinny MXU matmuls
    with f32 accumulation — no transpose, no im2col buffer, cast done here."""
    bh, p, wo, pc = x_ref.shape
    tm = bh * wo
    tile = x_ref[...]
    cdt = w_ref.dtype

    def partial_dot(ph):
        lhs = tile[:, ph].reshape(tm, pc).astype(cdt)
        return jnp.dot(lhs, w_ref[ph], preferred_element_type=jnp.float32)

    acc = partial_dot(0)
    for ph in range(1, p):                       # static unroll, p is small
        acc = acc + partial_dot(ph)
    o_ref[...] = (acc + shift_ref[...]).astype(o_ref.dtype)


# ---------------------------------------------------------------------------
# Primary (channels-last) entry point: NHWC in, (N, Ho, Wo, E) out.
# No wrapper-side transpose / cast / pad / slice — everything fused.
# ---------------------------------------------------------------------------
def patch_embed_forward_nhwc(x_nhwc, weight, gamma, beta, running_mean,
                             running_var, patch_size=4, eps=1e-5,
                             compute_dtype=jnp.bfloat16,
                             out_dtype=jnp.bfloat16, tm_target=4096):
    """x_nhwc: (N, H, W, C). weight: (E, C, p, p) (PyTorch Conv2d layout).
    Returns (N, H//p, W//p, E) in `out_dtype` (default bf16)."""
    N, H, W, C = x_nhwc.shape
    E = weight.shape[0]
    p = int(patch_size)
    assert H % p == 0 and W % p == 0
    Ho, Wo = H // p, W // p
    R = N * Ho
    pC = p * C
    M = R * Wo
    K = p * pC

    # (N,H,W,C) -> (N*Ho, p, Wo, p*C) is a pure (zero-copy) reshape.
    xr = x_nhwc.reshape(R, p, Wo, pC)

    # Fold eval-mode BN in f32: scale into the weight, keep only +shift.
    scale = gamma.astype(jnp.float32) / jnp.sqrt(running_var.astype(jnp.float32) + eps)
    shift = (beta.astype(jnp.float32)
             - running_mean.astype(jnp.float32) * scale).reshape(1, E)
    # Conv weight (E, C, ph, pw) -> (ph, pw*C, E) to match the patch-row layout.
    w3 = jnp.transpose(weight.astype(jnp.float32), (2, 3, 1, 0)).reshape(p, pC, E)
    w3 = (w3 * scale[None, None, :]).astype(compute_dtype)

    vmem_limit = _vmem_budget_bytes()
    bh, grid = _choose_bh(R, Wo, p, pC, E, x_nhwc.dtype, compute_dtype,
                          out_dtype, tm_target=tm_target,
                          vmem_budget=vmem_limit)
    tm = bh * Wo

    x_bytes = jnp.dtype(x_nhwc.dtype).itemsize
    w_bytes = jnp.dtype(compute_dtype).itemsize
    o_bytes = jnp.dtype(out_dtype).itemsize
    cost = pl.CostEstimate(
        flops=2 * M * K * E,
        transcendentals=0,
        bytes_accessed=M * K * x_bytes + K * E * w_bytes + M * E * o_bytes,
    )

    out2d = pl.pallas_call(
        _patch_embed_kernel,
        out_shape=jax.ShapeDtypeStruct((M, E), out_dtype),
        grid_spec=pltpu.PrefetchScalarGridSpec(
            num_scalar_prefetch=0,
            grid=(grid,),
            in_specs=[
                # Raw activation rows; ragged tail handled by Pallas (rows are
                # independent; OOB tail-block output stores are dropped).
                pl.BlockSpec((bh, p, Wo, pC), lambda i: (i, 0, 0, 0)),
                # Grid-invariant operands (fetched once by the pipeline).
                # TODO(synk): pipeline_mode=pl.Buffered(1) would drop the idle
                # second buffer for later large-K*E merging stages.
                pl.BlockSpec((p, pC, E), lambda i: (0, 0, 0)),
                pl.BlockSpec((1, E), lambda i: (0, 0)),
            ],
            out_specs=pl.BlockSpec((tm, E), lambda i: (i, 0)),
        ),
        compiler_params=pltpu.CompilerParams(
            # TODO(synk): on v7x verify in the profile that this axis is split
            # across both TensorCores; switch to pltpu.CORE_PARALLEL if not.
            dimension_semantics=("parallel",),
            vmem_limit_bytes=int(vmem_limit),
        ),
        cost_estimate=cost,
    )(xr, w3, shift)

    return out2d.reshape(N, Ho, Wo, E)


# ---------------------------------------------------------------------------
# PyTorch-parity entry point: NCHW in, NCHW out. Thin layout shim only —
# each transpose is one extra HBM pass, so prefer the NHWC entry above.
# ---------------------------------------------------------------------------
def patch_embed_forward(x, weight, gamma, beta, running_mean, running_var,
                        patch_size=4, eps=1e-5, compute_dtype=jnp.bfloat16,
                        out_dtype=jnp.bfloat16, channels_last_out=False,
                        tm_target=4096):
    """x: (N, C, H, W). Returns (N, E, H//p, W//p) (or NHWC-out if requested)."""
    x_nhwc = jnp.transpose(x, (0, 2, 3, 1))
    out = patch_embed_forward_nhwc(x_nhwc, weight, gamma, beta, running_mean,
                                   running_var, patch_size=patch_size, eps=eps,
                                   compute_dtype=compute_dtype,
                                   out_dtype=out_dtype, tm_target=tm_target)
    if channels_last_out:
        return out
    return jnp.transpose(out, (0, 3, 1, 2))


# ---------------------------------------------------------------------------
# Pure-JAX reference (conv as strided einsum + eval-mode BN), NCHW.
# ---------------------------------------------------------------------------
def _reference(x, weight, gamma, beta, running_mean, running_var, patch_size,
               eps=1e-5):
    N, C, H, W = x.shape
    E = weight.shape[0]
    p = patch_size
    Ho, Wo = H // p, W // p
    patches = x.reshape(N, C, Ho, p, Wo, p)
    patches = jnp.transpose(patches, (0, 2, 4, 1, 3, 5)).reshape(N, Ho, Wo, C * p * p)
    conv = jnp.einsum('nijk,ek->neij', patches, weight.reshape(E, -1),
                      precision=jax.lax.Precision.HIGHEST)
    scale = gamma / jnp.sqrt(running_var + eps)
    shift = beta - running_mean * scale
    return conv * scale[None, :, None, None] + shift[None, :, None, None]


if __name__ == "__main__":
    key = jax.random.PRNGKey(0)
    k0, k1, k2, k3, k4, k5 = jax.random.split(key, 6)

    # Small shapes: batch=2, in_chans=4, spatial=16, patch=4, embed_dim=32.
    N, C, H, W = 2, 4, 16, 16
    p = 4
    E = 32

    x = jax.random.normal(k0, (N, C, H, W), dtype=jnp.float32)
    weight = jax.random.normal(k1, (E, C, p, p), dtype=jnp.float32) * 0.1
    gamma = 1.0 + 0.1 * jax.random.normal(k2, (E,), dtype=jnp.float32)
    beta = 0.1 * jax.random.normal(k3, (E,), dtype=jnp.float32)
    running_mean = 0.1 * jax.random.normal(k4, (E,), dtype=jnp.float32)
    running_var = jnp.abs(1.0 + 0.1 * jax.random.normal(k5, (E,), dtype=jnp.float32))

    ref = _reference(x, weight, gamma, beta, running_mean, running_var, p)

    # 1) f32 compute / f32 output (tight tolerance), NCHW parity entry.
    out_f32 = patch_embed_forward(x, weight, gamma, beta, running_mean,
                                  running_var, patch_size=p,
                                  compute_dtype=jnp.float32,
                                  out_dtype=jnp.float32)
    out_f32 = jax.block_until_ready(out_f32)
    assert out_f32.shape == (N, E, H // p, W // p), out_f32.shape
    assert jnp.allclose(out_f32, ref, atol=1e-3, rtol=1e-3), "f32 path mismatch"

    # 2) Default path: bf16 compute + bf16 output, NCHW parity entry.
    out_bf16 = patch_embed_forward(x, weight, gamma, beta, running_mean,
                                   running_var, patch_size=p)
    out_bf16 = jax.block_until_ready(out_bf16)
    assert out_bf16.dtype == jnp.bfloat16
    assert jnp.allclose(out_bf16.astype(jnp.float32), ref,
                        atol=5e-2, rtol=5e-2), "bf16 path mismatch"

    # 3) Channels-last primary path (no layout passes at all).
    x_nhwc = jnp.transpose(x, (0, 2, 3, 1))
    out_nhwc = patch_embed_forward_nhwc(x_nhwc, weight, gamma, beta,
                                        running_mean, running_var, patch_size=p)
    out_nhwc = jax.block_until_ready(out_nhwc)
    assert jnp.allclose(jnp.transpose(out_nhwc.astype(jnp.float32), (0, 3, 1, 2)),
                        ref, atol=5e-2, rtol=5e-2), "nhwc path mismatch"

    # 4) Multi-block grid with a ragged tail (tiny tm_target forces >1 block
    #    and a non-divisible last block) on a FasterNet-like C=3 / E=96 shape:
    #    exercises the no-pad / dropped-OOB-store path.
    N2, C2, H2, W2, E2 = 3, 3, 32, 32, 96
    x2 = jax.random.normal(k0, (N2, H2, W2, C2), dtype=jnp.float32)
    w2 = jax.random.normal(k1, (E2, C2, p, p), dtype=jnp.float32) * 0.1
    g2 = 1.0 + 0.1 * jax.random.normal(k2, (E2,), dtype=jnp.float32)
    b2 = 0.1 * jax.random.normal(k3, (E2,), dtype=jnp.float32)
    m2 = 0.1 * jax.random.normal(k4, (E2,), dtype=jnp.float32)
    v2 = jnp.abs(1.0 + 0.1 * jax.random.normal(k5, (E2,), dtype=jnp.float32))
    ref2 = _reference(jnp.transpose(x2, (0, 3, 1, 2)), w2, g2, b2, m2, v2, p)
    out2 = patch_embed_forward_nhwc(x2, w2, g2, b2, m2, v2, patch_size=p,
                                    tm_target=1)
    out2 = jax.block_until_ready(out2)
    assert jnp.allclose(jnp.transpose(out2.astype(jnp.float32), (0, 3, 1, 2)),
                        ref2, atol=5e-2, rtol=5e-2), "ragged multi-block mismatch"

    print("KERNEL_OK")
</pallas_src>

<mosaic_0001>
module attributes {stable_mosaic.version = 11 : i64} {
  func.func @_patch_embed_kernel(%arg0: i32, %arg1: memref<8x4x4x16xf32, #tpu.memory_space<vmem>>, %arg2: memref<4x16x32xf32, #tpu.memory_space<vmem>>, %arg3: memref<1x32xf32, #tpu.memory_space<vmem>>, %arg4: memref<32x32xf32, #tpu.memory_space<vmem>>) attributes {dimension_semantics = [#tpu.dimension_semantics<parallel>], iteration_bounds = array<i64: 1>, scalar_prefetch = 0 : i64, scratch_operands = 0 : i64, tpu.core_type = #tpu.core_type<tc>, window_params = [{transform_indices = @transform_0, window_bounds = array<i64: 8, 4, 4, 16>}, {pipeline_mode = #tpu.pipeline_mode<synchronous>, transform_indices = @transform_1, window_bounds = array<i64: 4, 16, 32>}, {pipeline_mode = #tpu.pipeline_mode<synchronous>, transform_indices = @transform_2, window_bounds = array<i64: 1, 32>}, {transform_indices = @transform_3, window_bounds = array<i64: 32, 32>}]} {
    %c0 = arith.constant 0 : index
    %c0_0 = arith.constant 0 : index
    %c0_1 = arith.constant 0 : index
    %c0_2 = arith.constant 0 : index
    %0 = vector.load %arg1[%c0, %c0_0, %c0_1, %c0_2] : memref<8x4x4x16xf32, #tpu.memory_space<vmem>>, vector<8x4x4x16xf32>
    %1 = vector.extract_strided_slice %0 {offsets = [0, 0, 0, 0], sizes = [8, 1, 4, 16], strides = [1, 1, 1, 1]} : vector<8x4x4x16xf32> to vector<8x1x4x16xf32>
    %2 = vector.shape_cast %1 : vector<8x1x4x16xf32> to vector<8x4x16xf32>
    %3 = vector.shape_cast %2 : vector<8x4x16xf32> to vector<32x16xf32>
    %c0_3 = arith.constant 0 : index
    %c0_4 = arith.constant 0 : index
    %c0_5 = arith.constant 0 : index
    %4 = vector.load %arg2[%c0_3, %c0_4, %c0_5] : memref<4x16x32xf32, #tpu.memory_space<vmem>>, vector<1x16x32xf32>
    %5 = vector.shape_cast %4 : vector<1x16x32xf32> to vector<16x32xf32>
    %cst = arith.constant dense<0.000000e+00> : vector<32x32xf32>
    %6 = tpu.matmul %3, %5, %cst {dimension_numbers = #tpu.dot_dimension_numbers<[1], [0], [0], [1], [0, 0, 1, 1], [], []>} : vector<32x16xf32>, vector<16x32xf32>, vector<32x32xf32> -> vector<32x32xf32>
    %7 = vector.extract_strided_slice %0 {offsets = [0, 1, 0, 0], sizes = [8, 1, 4, 16], strides = [1, 1, 1, 1]} : vector<8x4x4x16xf32> to vector<8x1x4x16xf32>
    %8 = vector.shape_cast %7 : vector<8x1x4x16xf32> to vector<8x4x16xf32>
    %9 = vector.shape_cast %8 : vector<8x4x16xf32> to vector<32x16xf32>
    %c1 = arith.constant 1 : index
    %c0_6 = arith.constant 0 : index
    %c0_7 = arith.constant 0 : index
    %10 = vector.load %arg2[%c1, %c0_6, %c0_7] : memref<4x16x32xf32, #tpu.memory_space<vmem>>, vector<1x16x32xf32>
    %11 = vector.shape_cast %10 : vector<1x16x32xf32> to vector<16x32xf32>
    %cst_8 = arith.constant dense<0.000000e+00> : vector<32x32xf32>
    %12 = tpu.matmul %9, %11, %cst_8 {dimension_numbers = #tpu.dot_dimension_numbers<[1], [0], [0], [1], [0, 0, 1, 1], [], []>} : vector<32x16xf32>, vector<16x32xf32>, vector<32x32xf32> -> vector<32x32xf32>
    %13 = arith.addf %6, %12 : vector<32x32xf32>
    %14 = vector.extract_strided_slice %0 {offsets = [0, 2, 0, 0], sizes = [8, 1, 4, 16], strides = [1, 1, 1, 1]} : vector<8x4x4x16xf32> to vector<8x1x4x16xf32>
    %15 = vector.shape_cast %14 : vector<8x1x4x16xf32> to vector<8x4x16xf32>
    %16 = vector.shape_cast %15 : vector<8x4x16xf32> to vector<32x16xf32>
    %c2 = arith.constant 2 : index
    %c0_9 = arith.constant 0 : index
    %c0_10 = arith.constant 0 : index
    %17 = vector.load %arg2[%c2, %c0_9, %c0_10] : memref<4x16x32xf32, #tpu.memory_space<vmem>>, vector<1x16x32xf32>
    %18 = vector.shape_cast %17 : vector<1x16x32xf32> to vector<16x32xf32>
    %cst_11 = arith.constant dense<0.000000e+00> : vector<32x32xf32>
    %19 = tpu.matmul %16, %18, %cst_11 {dimension_numbers = #tpu.dot_dimension_numbers<[1], [0], [0], [1], [0, 0, 1, 1], [], []>} : vector<32x16xf32>, vector<16x32xf32>, vector<32x32xf32> -> vector<32x32xf32>
    %20 = arith.addf %13, %19 : vector<32x32xf32>
    %21 = vector.extract_strided_slice %0 {offsets = [0, 3, 0, 0], sizes = [8, 1, 4, 16], strides = [1, 1, 1, 1]} : vector<8x4x4x16xf32> to vector<8x1x4x16xf32>
    %22 = vector.shape_cast %21 : vector<8x1x4x16xf32> to vector<8x4x16xf32>
    %23 = vector.shape_cast %22 : vector<8x4x16xf32> to vector<32x16xf32>
    %c3 = arith.constant 3 : index
    %c0_12 = arith.constant 0 : index
    %c0_13 = arith.constant 0 : index
    %24 = vector.load %arg2[%c3, %c0_12, %c0_13] : memref<4x16x32xf32, #tpu.memory_space<vmem>>, vector<1x16x32xf32>
    %25 = vector.shape_cast %24 : vector<1x16x32xf32> to vector<16x32xf32>
    %cst_14 = arith.constant dense<0.000000e+00> : vector<32x32xf32>
    %26 = tpu.matmul %23, %25, %cst_14 {dimension_numbers = #tpu.dot_dimension_numbers<[1], [0], [0], [1], [0, 0, 1, 1], [], []>} : vector<32x16xf32>, vector<16x32xf32>, vector<32x32xf32> -> vector<32x32xf32>
    %27 = arith.addf %20, %26 : vector<32x32xf32>
    %c0_15 = arith.constant 0 : index
    %c0_16 = arith.constant 0 : index
    %28 = vector.load %arg3[%c0_15, %c0_16] : memref<1x32xf32, #tpu.memory_space<vmem>>, vector<1x32xf32>
    %29 = vector.broadcast %28 : vector<1x32xf32> to vector<32x32xf32>
    %30 = arith.addf %27, %29 : vector<32x32xf32>
    %c0_17 = arith.constant 0 : index
    %c0_18 = arith.constant 0 : index
    %31 = vector.load %arg4[%c0_17, %c0_18] : memref<32x32xf32, #tpu.memory_space<vmem>>, vector<32x32xf32>
    tpu.vector_store %arg4[%c0_17, %c0_18], %30 {strides = array<i32>} : memref<32x32xf32, #tpu.memory_space<vmem>>, vector<32x32xf32>,
    return
  }
  func.func @transform_0(%arg0: i32) -> (i32, i32, i32, i32) {
    %c0_i32 = arith.constant 0 : i32
    %c0_i32_0 = arith.constant 0 : i32
    %c0_i32_1 = arith.constant 0 : i32
    %c0_i32_2 = arith.constant 0 : i32
    return %arg0, %c0_i32, %c0_i32_0, %c0_i32_1 : i32, i32, i32, i32
  }
  func.func @transform_1(%arg0: i32) -> (i32, i32, i32) {
    %c0_i32 = arith.constant 0 : i32
    %c0_i32_0 = arith.constant 0 : i32
    %c0_i32_1 = arith.constant 0 : i32
    %c0_i32_2 = arith.constant 0 : i32
    return %c0_i32, %c0_i32_0, %c0_i32_1 : i32, i32, i32
  }
  func.func @transform_2(%arg0: i32) -> (i32, i32) {
    %c0_i32 = arith.constant 0 : i32
    %c0_i32_0 = arith.constant 0 : i32
    %c0_i32_1 = arith.constant 0 : i32
    return %c0_i32, %c0_i32_0 : i32, i32
  }
  func.func @transform_3(%arg0: i32) -> (i32, i32) {
    %c0_i32 = arith.constant 0 : i32
    %c0_i32_0 = arith.constant 0 : i32
    return %arg0, %c0_i32 : i32, i32
  }
}

</mosaic_0001>

<llo_original>
// kernel: tpu_custom_call.1
$region0: #{tpu_custom_call.1}
  #allocation0 [shape = 'u32[]', space=smem, size = 0x4, offset = 0x4, fixed_abs, tag = 'smem constant byte address 0x4 - core index']
  #allocation1 [shape = 'u32[144,128]{1,0:T(1,128)}', space=vmem, size = 0x12000, scoped, tag = 'internal scratch']
  %s0 = inlined_call_operand.hbm [shape: f32[8,4,4,16], index: 0, kind: input, shape index: {}]
  %s1 = inlined_call_operand.hbm [shape: f32[4,16,32], index: 1, kind: input, shape index: {}]
  %s2 = inlined_call_operand.vmem [shape: f32[1,32], index: 2, kind: input, shape index: {}]
  %s3 = inlined_call_operand.hbm [shape: f32[32,32], index: 3, kind: output, shape index: {}]
  %s4 = sld [smem:[#allocation0]]
  $region30: #{tpu_custom_call.1} parent=0
    _
  %s6 = ssub.s32 1, %s4
  %s7 = scalar_select 0, %s6, %s4
  $region1: #{tpu_custom_call.1} parent=0
    #allocation2 [shape = 'u8[65536]{0}', space=vmem, size = 0x10000, scoped, tag = 'input window, operand 0, single buffered']
    #allocation3 [shape = 's32[1]{0}', space=sflag, size = 0x4, scoped, tag = 'scoped memory for tpu_custom_call.1']
    #allocation4 [shape = 's32[1]{0}', space=sflag, size = 0x4, scoped, tag = 'scoped memory for tpu_custom_call.1']
    #allocation5 [shape = 'u8[32768]{0}', space=vmem, size = 0x8000, scoped, tag = 'input window, operand 1, single buffered']
    #allocation6 [shape = 's32[1]{0}', space=sflag, size = 0x4, scoped, tag = 'scoped memory for tpu_custom_call.1']
    #allocation7 [shape = 'u8[16384]{0}', space=vmem, size = 0x4000, scoped, tag = 'output window, operand 0, single buffered']
    %8 = vsyncpa [#allocation3], 0
    %9 = vsyncpa [#allocation6], 0
    %10 = vsyncpa [#allocation4], 0
    // Predicated region
    $region2: #{tpu_custom_call.1} parent=1 // pred_check
      _
    $region3: #{tpu_custom_call.1} parent=1 // pred_check_branch
      %12 = sbr.rel (0) target = $region5
    $region4: #{tpu_custom_call.1} parent=1 // pred_region
      %s14 = ssub.s32 2048, 2048
      %15 = vsyncadd [#allocation3], %s14
      %s16 = sshll.u32 [#allocation2], 4
      %s17 = int_to_ptr.vmem [resolvable:$true] %s16
      %22 = dma.hbm_to_vmem [thread:$0]  %s0, 2048, %s17, [#allocation3], 64, 64, 4
    $region5: #{tpu_custom_call.1} parent=1 // pred_fallthru
      _
    // Predicated region
    $region6: #{tpu_custom_call.1} parent=1 // pred_check
      _
    $region7: #{tpu_custom_call.1} parent=1 // pred_check_branch
      %24 = sbr.rel (0) target = $region9
    $region8: #{tpu_custom_call.1} parent=1 // pred_region
      %s26 = ssub.s32 1024, 1024
      %27 = vsyncadd [#allocation6], %s26
      %s28 = sshll.u32 [#allocation5], 4
      %s29 = int_to_ptr.vmem [resolvable:$true] %s28
      %34 = dma.hbm_to_vmem [thread:$0]  %s1, 1024, %s29, [#allocation6], 128, 128, 8
    $region9: #{tpu_custom_call.1} parent=1 // pred_fallthru
      _
    // Predicated region
    $region10: #{tpu_custom_call.1} parent=1 // pred_check
      _
    $region11: #{tpu_custom_call.1} parent=1 // pred_check_branch
      %36 = sbr.rel (0) target = $region13
    $region12: #{tpu_custom_call.1} parent=1 // pred_region
      _
    $region13: #{tpu_custom_call.1} parent=1 // pred_fallthru
      _
    // Predicated region
    $region14: #{tpu_custom_call.1} parent=1 // pred_check
      _
    $region15: #{tpu_custom_call.1} parent=1 // pred_check_branch
      %38 = sbr.rel (0) target = $region17
    $region16: #{tpu_custom_call.1} parent=1 // pred_region
      %39 = dma.done [#allocation3], 2048
    $region17: #{tpu_custom_call.1} parent=1 // pred_fallthru
      _
    // Predicated region
    $region18: #{tpu_custom_call.1} parent=1 // pred_check
      _
    $region19: #{tpu_custom_call.1} parent=1 // pred_check_branch
      %41 = sbr.rel (0) target = $region21
    $region20: #{tpu_custom_call.1} parent=1 // pred_region
      %42 = dma.done [#allocation6], 1024
    $region21: #{tpu_custom_call.1} parent=1 // pred_fallthru
      _
    %v43 = vld [vmem:[#allocation2] sm:$0xf]
    %v44 = vld [vmem:[#allocation2 + $0x4] sm:$0xf]
    %v45 = vld [vmem:[#allocation2 + $0x8] sm:$0xf]
    %v46 = vld [vmem:[#allocation2 + $0xc] sm:$0xf]
    %v47 = vld [vmem:[#allocation2 + $0x10] sm:$0xf]
    %v48 = vld [vmem:[#allocation2 + $0x14] sm:$0xf]
    %v49 = vld [vmem:[#allocation2 + $0x18] sm:$0xf]
    %v50 = vld [vmem:[#allocation2 + $0x1c] sm:$0xf]
    %v51 = vld [vmem:[#allocation2 + $0x20] sm:$0xf]
    %v52 = vld [vmem:[#allocation2 + $0x24] sm:$0xf]
    %v53 = vld [vmem:[#allocation2 + $0x28] sm:$0xf]
    %v54 = vld [vmem:[#allocation2 + $0x2c] sm:$0xf]
    %v55 = vld [vmem:[#allocation2 + $0x30] sm:$0xf]
    %v56 = vld [vmem:[#allocation2 + $0x34] sm:$0xf]
    %v57 = vld [vmem:[#allocation2 + $0x38] sm:$0xf]
    %v58 = vld [vmem:[#allocation2 + $0x3c] sm:$0xf]
    %v59 = vld [vmem:[#allocation2 + $0x40] sm:$0xf]
    %v60 = vld [vmem:[#allocation2 + $0x44] sm:$0xf]
    %v61 = vld [vmem:[#allocation2 + $0x48] sm:$0xf]
    %v62 = vld [vmem:[#allocation2 + $0x4c] sm:$0xf]
    %v63 = vld [vmem:[#allocation2 + $0x50] sm:$0xf]
    %v64 = vld [vmem:[#allocation2 + $0x54] sm:$0xf]
    %v65 = vld [vmem:[#allocation2 + $0x58] sm:$0xf]
    %v66 = vld [vmem:[#allocation2 + $0x5c] sm:$0xf]
    %v67 = vld [vmem:[#allocation2 + $0x60] sm:$0xf]
    %v68 = vld [vmem:[#allocation2 + $0x64] sm:$0xf]
    %v69 = vld [vmem:[#allocation2 + $0x68] sm:$0xf]
    %v70 = vld [vmem:[#allocation2 + $0x6c] sm:$0xf]
    %v71 = vld [vmem:[#allocation2 + $0x70] sm:$0xf]
    %v72 = vld [vmem:[#allocation2 + $0x74] sm:$0xf]
    %v73 = vld [vmem:[#allocation2 + $0x78] sm:$0xf]
    %v74 = vld [vmem:[#allocation2 + $0x7c] sm:$0xf]
    %v75 = vld [vmem:[#allocation5] sm:$0xff]
    %v76 = vld [vmem:[#allocation5 + $0x8] sm:$0xff]
    %s77 = scalar_lea.vmem [#allocation5], 16
    %v78 = vld [vmem:[%s77] sm:$0xff]
    %v79 = vld [vmem:[%s77 + $0x8] sm:$0xff]
    %v88 = vcombine.low %v44, %v48
    %v89 = vcombine.low %v52, %v56
    %v90 = vcombine.low %v60, %v64
    %v91 = vcombine.low %v68, %v72
    %vm92 = vcmask 130048
    %v93 = vsel %vm92, %v88, 0
    %v95 = vsel %vm92, %v89, 0
    %v97 = vsel %vm92, %v90, 0
    %v99 = vsel %vm92, %v91, 0
    %101 = vmatprep.subr.mxu0 0.0
    %102 = vmatpush1.msra.mxu0 %v78
    %103 = vmatprep.subr.mxu0 0.0
    %104 = vmatpush1.msra.mxu0 %v79
    %105 = vmatprep.subr.mxu0 0.0
    %106 = vmatpush1.msra.mxu0 0.0
    %107 = vmatprep.subr.mxu0 0.0
    %108 = vmatpush1.msra.mxu0 0.0
    %109 = vmatprep.subr.mxu0 0.0
    %110 = vmatpush1.msra.mxu0 0.0
    %111 = vmatprep.subr.mxu0 0.0
    %112 = vmatpush1.msra.mxu0 0.0
    %113 = vmatprep.subr.mxu0 0.0
    %114 = vmatpush1.msra.mxu0 0.0
    %115 = vmatprep.subr.mxu0 0.0
    %116 = vmatpush1.msra.mxu0 0.0
    %117 = vmatprep.subr.mxu0 0.0
    %118 = vmatpush1.msra.mxu0 0.0
    %119 = vmatprep.subr.mxu0 0.0
    %120 = vmatpush1.msra.mxu0 0.0
    %121 = vmatprep.subr.mxu0 0.0
    %122 = vmatpush1.msra.mxu0 0.0
    %123 = vmatprep.subr.mxu0 0.0
    %124 = vmatpush1.msra.mxu0 0.0
    %125 = vmatprep.subr.mxu0 0.0
    %126 = vmatpush1.msra.mxu0 0.0
    %127 = vmatprep.subr.mxu0 0.0
    %128 = vmatpush1.msra.mxu0 0.0
    %129 = vmatprep.subr.mxu0 0.0
    %130 = vmatpush1.msra.mxu0 0.0
    %131 = vmatprep.subr.mxu0 0.0
    %132 = vmatpush1.msra.mxu0 0.0
    %133 = vmatprep.subr.mxu0 0.0
    %134 = vmatpush1.msra.mxu0 0.0
    %135 = vmatprep.subr.mxu0 0.0
    %136 = vmatpush1.msra.mxu0 0.0
    %137 = vmatprep.subr.mxu0 0.0
    %138 = vmatpush1.msra.mxu0 0.0
    %139 = vmatprep.subr.mxu0 0.0
    %140 = vmatpush1.msra.mxu0 0.0
    %141 = vmatprep.subr.mxu0 0.0
    %142 = vmatpush1.msra.mxu0 0.0
    %143 = vmatprep.subr.mxu0 0.0
    %144 = vmatpush1.msra.mxu0 0.0
    %145 = vmatprep.subr.mxu0 0.0
    %146 = vmatpush1.msra.mxu0 0.0
    %147 = vmatprep.subr.mxu0 0.0
    %148 = vmatpush1.msra.mxu0 0.0
    %149 = vmatprep.subr.mxu0 0.0
    %150 = vmatpush1.msra.mxu0 0.0
    %151 = vmatprep.subr.mxu0 0.0
    %152 = vmatpush1.msra.mxu0 0.0
    %153 = vmatprep.subr.mxu0 0.0
    %154 = vmatpush1.msra.mxu0 0.0
    %155 = vmatprep.subr.mxu0 0.0
    %156 = vmatpush1.msra.mxu0 0.0
    %157 = vmatprep.subr.mxu0 0.0
    %158 = vmatpush1.msra.mxu0 0.0
    %159 = vmatprep.subr.mxu0 0.0
    %160 = vmatpush1.msra.mxu0 0.0
    %161 = vmatprep.subr.mxu0 0.0
    %162 = vmatpush1.msra.mxu0 0.0
    %163 = vmatprep.subr.mxu0 0.0
    %164 = vmatpush1.msra.mxu0 0.0
    %165 = vmatprep.mubr.f32.mxu0 0.0
    %166 = vmatmul.mubr.f32.gmra.mrb[0].mxu0 %v93
    %v167 = vpop.f32.mrb[0].mxu0
    %v168 = vadd.f32 0.0, %v167
    %v169 = vpop.f32.mrb[0].mxu0
    %170 = vmatprep.mubr.f32.mxu0 0.0
    %171 = vmatmul.mubr.f32.gmra.mrb[0].mxu0 %v95
    %v172 = vpop.f32.mrb[0].mxu0
    %v173 = vadd.f32 0.0, %v172
    %v174 = vpop.f32.mrb[0].mxu0
    %175 = vmatprep.mubr.f32.mxu0 0.0
    %176 = vmatmul.mubr.f32.gmra.mrb[0].mxu0 %v97
    %v177 = vpop.f32.mrb[0].mxu0
    %v178 = vadd.f32 0.0, %v177
    %v179 = vpop.f32.mrb[0].mxu0
    %180 = vmatprep.mubr.f32.mxu0 0.0
    %181 = vmatmul.mubr.f32.gmra.mrb[0].mxu0 %v99
    %v182 = vpop.f32.mrb[0].mxu0
    %v183 = vadd.f32 0.0, %v182
    %v184 = vpop.f32.mrb[0].mxu0
    %185 = vdwg.mxu0
    %v194 = vcombine.low %v43, %v47
    %v195 = vcombine.low %v51, %v55
    %v196 = vcombine.low %v59, %v63
    %v197 = vcombine.low %v67, %v71
    %v198 = vsel %vm92, %v194, 0
    %v200 = vsel %vm92, %v195, 0
    %v202 = vsel %vm92, %v196, 0
    %v204 = vsel %vm92, %v197, 0
    %206 = vmatprep.subr.mxu0 0.0
    %207 = vmatpush1.msra.mxu0 %v75
    %208 = vmatprep.subr.mxu0 0.0
    %209 = vmatpush1.msra.mxu0 %v76
    %210 = vmatprep.subr.mxu0 0.0
    %211 = vmatpush1.msra.mxu0 0.0
    %212 = vmatprep.subr.mxu0 0.0
    %213 = vmatpush1.msra.mxu0 0.0
    %214 = vmatprep.subr.mxu0 0.0
    %215 = vmatpush1.msra.mxu0 0.0
    %216 = vmatprep.subr.mxu0 0.0
    %217 = vmatpush1.msra.mxu0 0.0
    %218 = vmatprep.subr.mxu0 0.0
    %219 = vmatpush1.msra.mxu0 0.0
    %220 = vmatprep.subr.mxu0 0.0
    %221 = vmatpush1.msra.mxu0 0.0
    %222 = vmatprep.subr.mxu0 0.0
    %223 = vmatpush1.msra.mxu0 0.0
    %224 = vmatprep.subr.mxu0 0.0
    %225 = vmatpush1.msra.mxu0 0.0
    %226 = vmatprep.subr.mxu0 0.0
    %227 = vmatpush1.msra.mxu0 0.0
    %228 = vmatprep.subr.mxu0 0.0
    %229 = vmatpush1.msra.mxu0 0.0
    %230 = vmatprep.subr.mxu0 0.0
    %231 = vmatpush1.msra.mxu0 0.0
    %232 = vmatprep.subr.mxu0 0.0
    %233 = vmatpush1.msra.mxu0 0.0
    %234 = vmatprep.subr.mxu0 0.0
    %235 = vmatpush1.msra.mxu0 0.0
    %236 = vmatprep.subr.mxu0 0.0
    %237 = vmatpush1.msra.mxu0 0.0
    %238 = vmatprep.subr.mxu0 0.0
    %239 = vmatpush1.msra.mxu0 0.0
    %240 = vmatprep.subr.mxu0 0.0
    %241 = vmatpush1.msra.mxu0 0.0
    %242 = vmatprep.subr.mxu0 0.0
    %243 = vmatpush1.msra.mxu0 0.0
    %244 = vmatprep.subr.mxu0 0.0
    %245 = vmatpush1.msra.mxu0 0.0
    %246 = vmatprep.subr.mxu0 0.0
    %247 = vmatpush1.msra.mxu0 0.0
    %248 = vmatprep.subr.mxu0 0.0
    %249 = vmatpush1.msra.mxu0 0.0
    %250 = vmatprep.subr.mxu0 0.0
    %251 = vmatpush1.msra.mxu0 0.0
    %252 = vmatprep.subr.mxu0 0.0
    %253 = vmatpush1.msra.mxu0 0.0
    %254 = vmatprep.subr.mxu0 0.0
    %255 = vmatpush1.msra.mxu0 0.0
    %256 = vmatprep.subr.mxu0 0.0
    %257 = vmatpush1.msra.mxu0 0.0
    %258 = vmatprep.subr.mxu0 0.0
    %259 = vmatpush1.msra.mxu0 0.0
    %260 = vmatprep.subr.mxu0 0.0
    %261 = vmatpush1.msra.mxu0 0.0
    %262 = vmatprep.subr.mxu0 0.0
    %263 = vmatpush1.msra.mxu0 0.0
    %264 = vmatprep.subr.mxu0 0.0
    %265 = vmatpush1.msra.mxu0 0.0
    %266 = vmatprep.subr.mxu0 0.0
    %267 = vmatpush1.msra.mxu0 0.0
    %268 = vmatprep.subr.mxu0 0.0
    %269 = vmatpush1.msra.mxu0 0.0
    %270 = vmatprep.mubr.f32.mxu0 0.0
    %271 = vmatmul.mubr.f32.gmra.mrb[0].mxu0 %v198
    %v272 = vpop.f32.mrb[0].mxu0
    %v273 = vadd.f32 %v168, %v272
    %v274 = vpop.f32.mrb[0].mxu0
    %275 = vmatprep.mubr.f32.mxu0 0.0
    %276 = vmatmul.mubr.f32.gmra.mrb[0].mxu0 %v200
    %v277 = vpop.f32.mrb[0].mxu0
    %v278 = vadd.f32 %v173, %v277
    %v279 = vpop.f32.mrb[0].mxu0
    %280 = vmatprep.mubr.f32.mxu0 0.0
    %281 = vmatmul.mubr.f32.gmra.mrb[0].mxu0 %v202
    %v282 = vpop.f32.mrb[0].mxu0
    %v283 = vadd.f32 %v178, %v282
    %v284 = vpop.f32.mrb[0].mxu0
    %285 = vmatprep.mubr.f32.mxu0 0.0
    %286 = vmatmul.mubr.f32.gmra.mrb[0].mxu0 %v204
    %v287 = vpop.f32.mrb[0].mxu0
    %v288 = vadd.f32 %v183, %v287
    %v289 = vpop.f32.mrb[0].mxu0
    %290 = vdwg.mxu0
    %s291 = scalar_lea.vmem [#allocation5], 32
    %v292 = vld [vmem:[%s291] sm:$0xff]
    %v293 = vld [vmem:[%s291 + $0x8] sm:$0xff]
    %v302 = vcombine.low %v45, %v49
    %v303 = vcombine.low %v53, %v57
    %v304 = vcombine.low %v61, %v65
    %v305 = vcombine.low %v69, %v73
    %v306 = vsel %vm92, %v302, 0
    %v308 = vsel %vm92, %v303, 0
    %v310 = vsel %vm92, %v304, 0
    %v312 = vsel %vm92, %v305, 0
    %314 = vmatprep.subr.mxu0 0.0
    %315 = vmatpush1.msra.mxu0 %v292
    %316 = vmatprep.subr.mxu0 0.0
    %317 = vmatpush1.msra.mxu0 %v293
    %318 = vmatprep.subr.mxu0 0.0
    %319 = vmatpush1.msra.mxu0 0.0
    %320 = vmatprep.subr.mxu0 0.0
    %321 = vmatpush1.msra.mxu0 0.0
    %322 = vmatprep.subr.mxu0 0.0
    %323 = vmatpush1.msra.mxu0 0.0
    %324 = vmatprep.subr.mxu0 0.0
    %325 = vmatpush1.msra.mxu0 0.0
    %326 = vmatprep.subr.mxu0 0.0
    %327 = vmatpush1.msra.mxu0 0.0
    %328 = vmatprep.subr.mxu0 0.0
    %329 = vmatpush1.msra.mxu0 0.0
    %330 = vmatprep.subr.mxu0 0.0
    %331 = vmatpush1.msra.mxu0 0.0
    %332 = vmatprep.subr.mxu0 0.0
    %333 = vmatpush1.msra.mxu0 0.0
    %334 = vmatprep.subr.mxu0 0.0
    %335 = vmatpush1.msra.mxu0 0.0
    %336 = vmatprep.subr.mxu0 0.0
    %337 = vmatpush1.msra.mxu0 0.0
    %338 = vmatprep.subr.mxu0 0.0
    %339 = vmatpush1.msra.mxu0 0.0
    %340 = vmatprep.subr.mxu0 0.0
    %341 = vmatpush1.msra.mxu0 0.0
    %342 = vmatprep.subr.mxu0 0.0
    %343 = vmatpush1.msra.mxu0 0.0
    %344 = vmatprep.subr.mxu0 0.0
    %345 = vmatpush1.msra.mxu0 0.0
    %346 = vmatprep.subr.mxu0 0.0
    %347 = vmatpush1.msra.mxu0 0.0
    %348 = vmatprep.subr.mxu0 0.0
    %349 = vmatpush1.msra.mxu0 0.0
    %350 = vmatprep.subr.mxu0 0.0
    %351 = vmatpush1.msra.mxu0 0.0
    %352 = vmatprep.subr.mxu0 0.0
    %353 = vmatpush1.msra.mxu0 0.0
    %354 = vmatprep.subr.mxu0 0.0
    %355 = vmatpush1.msra.mxu0 0.0
    %356 = vmatprep.subr.mxu0 0.0
    %357 = vmatpush1.msra.mxu0 0.0
    %358 = vmatprep.subr.mxu0 0.0
    %359 = vmatpush1.msra.mxu0 0.0
    %360 = vmatprep.subr.mxu0 0.0
    %361 = vmatpush1.msra.mxu0 0.0
    %362 = vmatprep.subr.mxu0 0.0
    %363 = vmatpush1.msra.mxu0 0.0
    %364 = vmatprep.subr.mxu0 0.0
    %365 = vmatpush1.msra.mxu0 0.0
    %366 = vmatprep.subr.mxu0 0.0
    %367 = vmatpush1.msra.mxu0 0.0
    %368 = vmatprep.subr.mxu0 0.0
    %369 = vmatpush1.msra.mxu0 0.0
    %370 = vmatprep.subr.mxu0 0.0
    %371 = vmatpush1.msra.mxu0 0.0
    %372 = vmatprep.subr.mxu0 0.0
    %373 = vmatpush1.msra.mxu0 0.0
    %374 = vmatprep.subr.mxu0 0.0
    %375 = vmatpush1.msra.mxu0 0.0
    %376 = vmatprep.subr.mxu0 0.0
    %377 = vmatpush1.msra.mxu0 0.0
    %378 = vmatprep.mubr.f32.mxu0 0.0
    %379 = vmatmul.mubr.f32.gmra.mrb[0].mxu0 %v306
    %v380 = vpop.f32.mrb[0].mxu0
    %v381 = vadd.f32 0.0, %v380
    %v382 = vpop.f32.mrb[0].mxu0
    %383 = vmatprep.mubr.f32.mxu0 0.0
    %384 = vmatmul.mubr.f32.gmra.mrb[0].mxu0 %v308
    %v385 = vpop.f32.mrb[0].mxu0
    %v386 = vadd.f32 0.0, %v385
    %v387 = vpop.f32.mrb[0].mxu0
    %388 = vmatprep.mubr.f32.mxu0 0.0
    %389 = vmatmul.mubr.f32.gmra.mrb[0].mxu0 %v310
    %v390 = vpop.f32.mrb[0].mxu0
    %v391 = vadd.f32 0.0, %v390
    %v392 = vpop.f32.mrb[0].mxu0
    %393 = vmatprep.mubr.f32.mxu0 0.0
    %394 = vmatmul.mubr.f32.gmra.mrb[0].mxu0 %v312
    %v395 = vpop.f32.mrb[0].mxu0
    %v396 = vadd.f32 0.0, %v395
    %v397 = vpop.f32.mrb[0].mxu0
    %398 = vdwg.mxu0
    %v399 = vadd.f32 %v273, %v381
    %v400 = vadd.f32 %v278, %v386
    %v401 = vadd.f32 %v283, %v391
    %v402 = vadd.f32 %v288, %v396
    %s403 = scalar_lea.vmem [#allocation5], 48
    %v404 = vld [vmem:[%s403] sm:$0xff]
    %v405 = vld [vmem:[%s403 + $0x8] sm:$0xff]
    %v414 = vcombine.low %v46, %v50
    %v415 = vcombine.low %v54, %v58
    %v416 = vcombine.low %v62, %v66
    %v417 = vcombine.low %v70, %v74
    %v418 = vsel %vm92, %v414, 0
    %v420 = vsel %vm92, %v415, 0
    %v422 = vsel %vm92, %v416, 0
    %v424 = vsel %vm92, %v417, 0
    %426 = vmatprep.subr.mxu0 0.0
    %427 = vmatpush1.msra.mxu0 %v404
    %428 = vmatprep.subr.mxu0 0.0
    %429 = vmatpush1.msra.mxu0 %v405
    %430 = vmatprep.subr.mxu0 0.0
    %431 = vmatpush1.msra.mxu0 0.0
    %432 = vmatprep.subr.mxu0 0.0
    %433 = vmatpush1.msra.mxu0 0.0
    %434 = vmatprep.subr.mxu0 0.0
    %435 = vmatpush1.msra.mxu0 0.0
    %436 = vmatprep.subr.mxu0 0.0
    %437 = vmatpush1.msra.mxu0 0.0
    %438 = vmatprep.subr.mxu0 0.0
    %439 = vmatpush1.msra.mxu0 0.0
    %440 = vmatprep.subr.mxu0 0.0
    %441 = vmatpush1.msra.mxu0 0.0
    %442 = vmatprep.subr.mxu0 0.0
    %443 = vmatpush1.msra.mxu0 0.0
    %444 = vmatprep.subr.mxu0 0.0
    %445 = vmatpush1.msra.mxu0 0.0
    %446 = vmatprep.subr.mxu0 0.0
    %447 = vmatpush1.msra.mxu0 0.0
    %448 = vmatprep.subr.mxu0 0.0
    %449 = vmatpush1.msra.mxu0 0.0
    %450 = vmatprep.subr.mxu0 0.0
    %451 = vmatpush1.msra.mxu0 0.0
    %452 = vmatprep.subr.mxu0 0.0
    %453 = vmatpush1.msra.mxu0 0.0
    %454 = vmatprep.subr.mxu0 0.0
    %455 = vmatpush1.msra.mxu0 0.0
    %456 = vmatprep.subr.mxu0 0.0
    %457 = vmatpush1.msra.mxu0 0.0
    %458 = vmatprep.subr.mxu0 0.0
    %459 = vmatpush1.msra.mxu0 0.0
    %460 = vmatprep.subr.mxu0 0.0
    %461 = vmatpush1.msra.mxu0 0.0
    %462 = vmatprep.subr.mxu0 0.0
    %463 = vmatpush1.msra.mxu0 0.0
    %464 = vmatprep.subr.mxu0 0.0
    %465 = vmatpush1.msra.mxu0 0.0
    %466 = vmatprep.subr.mxu0 0.0
    %467 = vmatpush1.msra.mxu0 0.0
    %468 = vmatprep.subr.mxu0 0.0
    %469 = vmatpush1.msra.mxu0 0.0
    %470 = vmatprep.subr.mxu0 0.0
    %471 = vmatpush1.msra.mxu0 0.0
    %472 = vmatprep.subr.mxu0 0.0
    %473 = vmatpush1.msra.mxu0 0.0
    %474 = vmatprep.subr.mxu0 0.0
    %475 = vmatpush1.msra.mxu0 0.0
    %476 = vmatprep.subr.mxu0 0.0
    %477 = vmatpush1.msra.mxu0 0.0
    %478 = vmatprep.subr.mxu0 0.0
    %479 = vmatpush1.msra.mxu0 0.0
    %480 = vmatprep.subr.mxu0 0.0
    %481 = vmatpush1.msra.mxu0 0.0
    %482 = vmatprep.subr.mxu0 0.0
    %483 = vmatpush1.msra.mxu0 0.0
    %484 = vmatprep.subr.mxu0 0.0
    %485 = vmatpush1.msra.mxu0 0.0
    %486 = vmatprep.subr.mxu0 0.0
    %487 = vmatpush1.msra.mxu0 0.0
    %488 = vmatprep.subr.mxu0 0.0
    %489 = vmatpush1.msra.mxu0 0.0
    %490 = vmatprep.mubr.f32.mxu0 0.0
    %491 = vmatmul.mubr.f32.gmra.mrb[0].mxu0 %v418
    %v492 = vpop.f32.mrb[0].mxu0
    %v493 = vadd.f32 0.0, %v492
    %v494 = vpop.f32.mrb[0].mxu0
    %495 = vmatprep.mubr.f32.mxu0 0.0
    %496 = vmatmul.mubr.f32.gmra.mrb[0].mxu0 %v420
    %v497 = vpop.f32.mrb[0].mxu0
    %v498 = vadd.f32 0.0, %v497
    %v499 = vpop.f32.mrb[0].mxu0
    %500 = vmatprep.mubr.f32.mxu0 0.0
    %501 = vmatmul.mubr.f32.gmra.mrb[0].mxu0 %v422
    %v502 = vpop.f32.mrb[0].mxu0
    %v503 = vadd.f32 0.0, %v502
    %v504 = vpop.f32.mrb[0].mxu0
    %505 = vmatprep.mubr.f32.mxu0 0.0
    %506 = vmatmul.mubr.f32.gmra.mrb[0].mxu0 %v424
    %v507 = vpop.f32.mrb[0].mxu0
    %v508 = vadd.f32 0.0, %v507
    %v509 = vpop.f32.mrb[0].mxu0
    %510 = vdwg.mxu0
    %v511 = vadd.f32 %v399, %v493
    %v512 = vadd.f32 %v400, %v498
    %v513 = vadd.f32 %v401, %v503
    %v514 = vadd.f32 %v402, %v508
    %v515 = vld [vmem:[%s2] sm:$0x1]
    %v517 = vlaneseq
    %v518 = vshrl.u32 %v517, 7
    %v519 = vsub.s32 0, %v518
    %v520 = vrot.slane %v515, %v519
    %v522 = vadd.f32 %v511, %v520
    %v523 = vadd.f32 %v512, %v520
    %v524 = vadd.f32 %v513, %v520
    %v525 = vadd.f32 %v514, %v520
    %vm526 = vcmask 261120
    %527 = vst.msk [vmem:[#allocation7] sm:$0xff] %vm526, %v522
    %528 = vst.msk [vmem:[#allocation7 + $0x8] sm:$0xff] %vm526, %v523
    %529 = vst.msk [vmem:[#allocation7 + $0x10] sm:$0xff] %vm526, %v524
    %530 = vst.msk [vmem:[#allocation7 + $0x18] sm:$0xff] %vm526, %v525
    // Predicated region
    $region22: #{tpu_custom_call.1} parent=1 // pred_check
      _
    $region23: #{tpu_custom_call.1} parent=1 // pred_check_branch
      %532 = sbr.rel (0) target = $region25
    $region24: #{tpu_custom_call.1} parent=1 // pred_region
      %s534 = ssub.s32 512, 512
      %535 = vsyncadd [#allocation4], %s534
      %s536 = sshll.u32 [#allocation7], 4
      %s537 = int_to_ptr.vmem [resolvable:$true] %s536
      %542 = dma.vmem_to_hbm [thread:$0]  %s537, 512, %s3, [#allocation4], 128, 128, 8
    $region25: #{tpu_custom_call.1} parent=1 // pred_fallthru
      _
    // Predicated region
    $region26: #{tpu_custom_call.1} parent=1 // pred_check
      _
    $region27: #{tpu_custom_call.1} parent=1 // pred_check_branch
      %544 = sbr.rel (0) target = $region29
    $region28: #{tpu_custom_call.1} parent=1 // pred_region
      %545 = dma.done [#allocation4], 512
    $region29: #{tpu_custom_call.1} parent=1 // pred_fallthru
      _
    %546 = vsyncpa [#allocation3], 1
    %547 = vsyncpa [#allocation6], 1
    %548 = vsyncpa [#allocation4], 1

</llo_original>
